<compile_context>
chip_gen: v7x
topology: tpu7x:2x2x1
jax: 0.10.0
libtpu: 0.0.40
codegen_flags: <defaults>
</compile_context>

<pallas_src>
import functools

import jax
import jax.numpy as jnp
from jax.experimental import pallas as pl
from jax.experimental.pallas import tpu as pltpu

_H1 = 16
_H2 = 32


def _round_up(n: int, m: int) -> int:
    return ((n + m - 1) // m) * m


def _choose_tile(batch: int, block_b: int) -> int:
    """Batch tile: big (fewer grid steps), multiple of 8, but >=2 grid steps
    whenever the batch can be split (so both v7x TensorCores get work)."""
    tb = min(block_b, _round_up(batch, 8))
    if batch >= 16 and _round_up(batch, tb) // tb < 2:
        tb = min(tb, _round_up((batch + 1) // 2, 8))
    return tb


def _policy_kernel(x_ref, w1_ref, b1_ref, w2_ref, b2_ref, wh_ref, bh_ref,
                   means_ref, std_ref, *, action_dims: int):
    x = x_ref[...]                              # (TB, obs_dims), float32
    obs_dims = x.shape[1]

    # ---- Layer 1: obs_dims -> 16.
    # K is tiny (e.g. 4): the MXU would be nearly empty; use unrolled VPU
    # broadcast-multiply-adds instead.
    if obs_dims <= 8:
        pre1 = b1_ref[...]                      # (1, H1), broadcasts up
        for k in range(obs_dims):               # static unroll
            pre1 = pre1 + x[:, k:k + 1] * w1_ref[k:k + 1, :]
    else:
        pre1 = jnp.dot(x, w1_ref[...],
                       preferred_element_type=jnp.float32) + b1_ref[...]
    h1 = jnp.tanh(pre1)

    # ---- Layer 2: 16 -> 32 (MXU, f32 accumulate; weights may be bf16).
    h2 = jnp.tanh(
        jnp.dot(h1.astype(w2_ref.dtype), w2_ref[...],
                preferred_element_type=jnp.float32) + b2_ref[...])

    # ---- Fused heads: one narrow (32, 2*action_dims) matmul, then split.
    z = jnp.dot(h2.astype(wh_ref.dtype), wh_ref[...],
                preferred_element_type=jnp.float32) + bh_ref[...]
    means_ref[...] = z[:, :action_dims]
    # Naive softplus exactly as the torch module writes it.
    # TODO(synk): jnp.logaddexp(0., z) is the numerically-safe equivalent.
    std_ref[...] = jnp.log(1.0 + jnp.exp(z[:, action_dims:]))


def init_params(key, obs_dims: int, action_dims: int):
    """PyTorch-style uniform(+/- 1/sqrt(fan_in)) init.

    Weights stored as (in_features, out_features); biases as (1, out)."""
    def linear(k, fan_in, fan_out):
        kw, kb = jax.random.split(k)
        bound = 1.0 / jnp.sqrt(float(fan_in))
        w = jax.random.uniform(kw, (fan_in, fan_out), jnp.float32, -bound, bound)
        b = jax.random.uniform(kb, (1, fan_out), jnp.float32, -bound, bound)
        return w, b

    k1, k2, k3, k4 = jax.random.split(key, 4)
    w1, b1 = linear(k1, obs_dims, _H1)
    w2, b2 = linear(k2, _H1, _H2)
    wm, bm = linear(k3, _H2, action_dims)
    ws, bs = linear(k4, _H2, action_dims)
    return dict(w1=w1, b1=b1, w2=w2, b2=b2, wm=wm, bm=bm, ws=ws, bs=bs)


def fuse_head_params(params):
    """Pack Wm||Ws (and bm||bs) into one narrow (32, 2*action_dims) slab."""
    wh = jnp.concatenate([params["wm"], params["ws"]], axis=1)
    bh = jnp.concatenate([params["bm"], params["bs"]], axis=1)
    return dict(w1=params["w1"], b1=params["b1"],
                w2=params["w2"], b2=params["b2"],
                wh=wh, bh=bh)


@functools.partial(
    jax.jit,
    static_argnames=("action_dims", "block_b", "min_pallas_batch", "use_bf16"))
def policy_network_forward(x, fused_params, action_dims: int, *,
                           block_b: int = 2048,
                           min_pallas_batch: int = 0,
                           use_bf16: bool = False):
    """x: (B, obs_dims). Returns (means, stddevs), each (B, action_dims)."""
    x = x.astype(jnp.float32)                   # mirrors x.float() in torch
    B, obs_dims = x.shape
    a = action_dims
    w1, b1 = fused_params["w1"], fused_params["b1"]
    w2, b2 = fused_params["w2"], fused_params["b2"]
    wh, bh = fused_params["wh"], fused_params["bh"]
    h1n, h2n = b1.shape[1], b2.shape[1]

    # Per-step RL acting batches: plain XLA fusion beats pallas_call overhead.
    if B < min_pallas_batch:
        h1 = jnp.tanh(x @ w1 + b1)
        h2 = jnp.tanh(h1 @ w2.astype(jnp.float32) + b2)
        z = h2 @ wh.astype(jnp.float32) + bh
        return z[:, :a], jnp.log(1.0 + jnp.exp(z[:, a:]))

    if use_bf16:
        # bf16-native MXU path for v6e/v7x; f32 accumulation is kept in-kernel.
        w2 = w2.astype(jnp.bfloat16)
        wh = wh.astype(jnp.bfloat16)

    tb = _choose_tile(B, block_b)
    b_pad = _round_up(B, tb)
    if b_pad != B:
        x = jnp.pad(x, ((0, b_pad - B), (0, 0)))
    grid = (b_pad // tb,)

    flops = 2.0 * b_pad * (obs_dims * h1n + h1n * h2n + h2n * 2 * a)
    transcendentals = float(b_pad) * (h1n + h2n + 2 * a)
    bytes_accessed = 4.0 * (b_pad * obs_dims + 2.0 * b_pad * a
                            + w1.size + b1.size + w2.size + b2.size
                            + wh.size + bh.size)

    means, stds = pl.pallas_call(
        functools.partial(_policy_kernel, action_dims=a),
        out_shape=(jax.ShapeDtypeStruct((b_pad, a), jnp.float32),
                   jax.ShapeDtypeStruct((b_pad, a), jnp.float32)),
        grid=grid,
        in_specs=[
            pl.BlockSpec((tb, obs_dims), lambda i: (i, 0)),   # x: streamed
            pl.BlockSpec((obs_dims, h1n), lambda i: (0, 0)),  # weights: resident
            pl.BlockSpec((1, h1n), lambda i: (0, 0)),
            pl.BlockSpec((h1n, h2n), lambda i: (0, 0)),
            pl.BlockSpec((1, h2n), lambda i: (0, 0)),
            pl.BlockSpec((h2n, 2 * a), lambda i: (0, 0)),
            pl.BlockSpec((1, 2 * a), lambda i: (0, 0)),
        ],
        out_specs=(pl.BlockSpec((tb, a), lambda i: (i, 0)),   # narrow outputs
                   pl.BlockSpec((tb, a), lambda i: (i, 0))),
        compiler_params=pltpu.CompilerParams(
            dimension_semantics=("parallel",)),
        cost_estimate=pl.CostEstimate(
            flops=int(flops),
            transcendentals=int(transcendentals),
            bytes_accessed=int(bytes_accessed)),
    )(x, w1, b1, w2, b2, wh, bh)

    if b_pad != B:
        means, stds = means[:B], stds[:B]
    return means, stds


if __name__ == "__main__":
    key = jax.random.PRNGKey(0)
    k_x, k_x2, k_p = jax.random.split(key, 3)

    obs_dims = 4          # e.g. InvertedPendulum observation dim
    action_dims = 2

    params = init_params(k_p, obs_dims, action_dims)
    fused = fuse_head_params(params)

    def reference(xin):
        xin = xin.astype(jnp.float32)
        h1 = jnp.tanh(xin @ params["w1"] + params["b1"])
        h2 = jnp.tanh(h1 @ params["w2"] + params["b2"])
        m = h2 @ params["wm"] + params["bm"]
        s = jnp.log(1.0 + jnp.exp(h2 @ params["ws"] + params["bs"]))
        return m, s

    # --- Small batch (single grid step). ---
    batch = 8
    x = jax.random.normal(k_x, (batch, obs_dims), jnp.float32)
    means, stddevs = policy_network_forward(x, fused, action_dims)
    jax.block_until_ready((means, stddevs))
    ref_m, ref_s = reference(x)
    assert means.shape == (batch, action_dims)
    assert stddevs.shape == (batch, action_dims)
    assert jnp.allclose(means, ref_m, atol=1e-5, rtol=1e-5)
    assert jnp.allclose(stddevs, ref_s, atol=1e-5, rtol=1e-5)
    assert bool(jnp.all(stddevs > 0.0))

    # --- Ragged batch -> >=2 grid steps (v7x megacore) + row padding. ---
    batch2 = 1000
    x2 = jax.random.normal(k_x2, (batch2, obs_dims), jnp.float32)
    means2, stddevs2 = policy_network_forward(x2, fused, action_dims)
    jax.block_until_ready((means2, stddevs2))
    ref_m2, ref_s2 = reference(x2)
    assert means2.shape == (batch2, action_dims)
    assert jnp.allclose(means2, ref_m2, atol=1e-5, rtol=1e-5)
    assert jnp.allclose(stddevs2, ref_s2, atol=1e-5, rtol=1e-5)

    # --- Optional bf16 weight path (v6e/v7x); loose tolerance. ---
    means3, stddevs3 = policy_network_forward(x2, fused, action_dims,
                                              use_bf16=True)
    jax.block_until_ready((means3, stddevs3))
    assert jnp.allclose(means3, ref_m2, atol=1e-1, rtol=1e-1)
    assert jnp.allclose(stddevs3, ref_s2, atol=1e-1, rtol=1e-1)

    print("KERNEL_OK")
</pallas_src>

<mosaic_0001>
module attributes {stable_mosaic.version = 11 : i64} {
  func.func @_policy_kernel(%arg0: i32, %arg1: memref<8x4xf32, #tpu.memory_space<vmem>>, %arg2: memref<4x16xf32, #tpu.memory_space<vmem>>, %arg3: memref<1x16xf32, #tpu.memory_space<vmem>>, %arg4: memref<16x32xf32, #tpu.memory_space<vmem>>, %arg5: memref<1x32xf32, #tpu.memory_space<vmem>>, %arg6: memref<32x4xf32, #tpu.memory_space<vmem>>, %arg7: memref<1x4xf32, #tpu.memory_space<vmem>>, %arg8: memref<8x2xf32, #tpu.memory_space<vmem>>, %arg9: memref<8x2xf32, #tpu.memory_space<vmem>>) attributes {dimension_semantics = [#tpu.dimension_semantics<parallel>], iteration_bounds = array<i64: 1>, scalar_prefetch = 0 : i64, scratch_operands = 0 : i64, tpu.core_type = #tpu.core_type<tc>, window_params = [{transform_indices = @transform_0, window_bounds = array<i64: 8, 4>}, {pipeline_mode = #tpu.pipeline_mode<synchronous>, transform_indices = @transform_1, window_bounds = array<i64: 4, 16>}, {pipeline_mode = #tpu.pipeline_mode<synchronous>, transform_indices = @transform_2, window_bounds = array<i64: 1, 16>}, {pipeline_mode = #tpu.pipeline_mode<synchronous>, transform_indices = @transform_3, window_bounds = array<i64: 16, 32>}, {pipeline_mode = #tpu.pipeline_mode<synchronous>, transform_indices = @transform_4, window_bounds = array<i64: 1, 32>}, {pipeline_mode = #tpu.pipeline_mode<synchronous>, transform_indices = @transform_5, window_bounds = array<i64: 32, 4>}, {pipeline_mode = #tpu.pipeline_mode<synchronous>, transform_indices = @transform_6, window_bounds = array<i64: 1, 4>}, {transform_indices = @transform_7, window_bounds = array<i64: 8, 2>}, {transform_indices = @transform_8, window_bounds = array<i64: 8, 2>}]} {
    %c0 = arith.constant 0 : index
    %c0_0 = arith.constant 0 : index
    %0 = vector.load %arg1[%c0, %c0_0] : memref<8x4xf32, #tpu.memory_space<vmem>>, vector<8x4xf32>
    %c0_1 = arith.constant 0 : index
    %c0_2 = arith.constant 0 : index
    %1 = vector.load %arg3[%c0_1, %c0_2] : memref<1x16xf32, #tpu.memory_space<vmem>>, vector<1x16xf32>
    %2 = vector.extract_strided_slice %0 {offsets = [0, 0], sizes = [8, 1], strides = [1, 1]} : vector<8x4xf32> to vector<8x1xf32>
    %c0_3 = arith.constant 0 : index
    %c0_4 = arith.constant 0 : index
    %3 = vector.load %arg2[%c0_3, %c0_4] : memref<4x16xf32, #tpu.memory_space<vmem>>, vector<1x16xf32>
    %4 = vector.broadcast %2 : vector<8x1xf32> to vector<8x16xf32>
    %5 = vector.broadcast %3 : vector<1x16xf32> to vector<8x16xf32>
    %6 = arith.mulf %4, %5 : vector<8x16xf32>
    %7 = vector.broadcast %1 : vector<1x16xf32> to vector<8x16xf32>
    %8 = arith.addf %7, %6 : vector<8x16xf32>
    %9 = vector.extract_strided_slice %0 {offsets = [0, 1], sizes = [8, 1], strides = [1, 1]} : vector<8x4xf32> to vector<8x1xf32>
    %c1 = arith.constant 1 : index
    %c0_5 = arith.constant 0 : index
    %10 = vector.load %arg2[%c1, %c0_5] : memref<4x16xf32, #tpu.memory_space<vmem>>, vector<1x16xf32>
    %11 = vector.broadcast %9 : vector<8x1xf32> to vector<8x16xf32>
    %12 = vector.broadcast %10 : vector<1x16xf32> to vector<8x16xf32>
    %13 = arith.mulf %11, %12 : vector<8x16xf32>
    %14 = arith.addf %8, %13 : vector<8x16xf32>
    %15 = vector.extract_strided_slice %0 {offsets = [0, 2], sizes = [8, 1], strides = [1, 1]} : vector<8x4xf32> to vector<8x1xf32>
    %c2 = arith.constant 2 : index
    %c0_6 = arith.constant 0 : index
    %16 = vector.load %arg2[%c2, %c0_6] : memref<4x16xf32, #tpu.memory_space<vmem>>, vector<1x16xf32>
    %17 = vector.broadcast %15 : vector<8x1xf32> to vector<8x16xf32>
    %18 = vector.broadcast %16 : vector<1x16xf32> to vector<8x16xf32>
    %19 = arith.mulf %17, %18 : vector<8x16xf32>
    %20 = arith.addf %14, %19 : vector<8x16xf32>
    %21 = vector.extract_strided_slice %0 {offsets = [0, 3], sizes = [8, 1], strides = [1, 1]} : vector<8x4xf32> to vector<8x1xf32>
    %c3 = arith.constant 3 : index
    %c0_7 = arith.constant 0 : index
    %22 = vector.load %arg2[%c3, %c0_7] : memref<4x16xf32, #tpu.memory_space<vmem>>, vector<1x16xf32>
    %23 = vector.broadcast %21 : vector<8x1xf32> to vector<8x16xf32>
    %24 = vector.broadcast %22 : vector<1x16xf32> to vector<8x16xf32>
    %25 = arith.mulf %23, %24 : vector<8x16xf32>
    %26 = arith.addf %20, %25 : vector<8x16xf32>
    %27 = math.tanh %26 : vector<8x16xf32>
    %c0_8 = arith.constant 0 : index
    %c0_9 = arith.constant 0 : index
    %28 = vector.load %arg4[%c0_8, %c0_9] : memref<16x32xf32, #tpu.memory_space<vmem>>, vector<16x32xf32>
    %cst = arith.constant dense<0.000000e+00> : vector<8x32xf32>
    %29 = tpu.matmul %27, %28, %cst {dimension_numbers = #tpu.dot_dimension_numbers<[1], [0], [0], [1], [0, 0, 1, 1], [], []>} : vector<8x16xf32>, vector<16x32xf32>, vector<8x32xf32> -> vector<8x32xf32>
    %c0_10 = arith.constant 0 : index
    %c0_11 = arith.constant 0 : index
    %30 = vector.load %arg5[%c0_10, %c0_11] : memref<1x32xf32, #tpu.memory_space<vmem>>, vector<1x32xf32>
    %31 = vector.broadcast %30 : vector<1x32xf32> to vector<8x32xf32>
    %32 = arith.addf %29, %31 : vector<8x32xf32>
    %33 = math.tanh %32 : vector<8x32xf32>
    %c0_12 = arith.constant 0 : index
    %c0_13 = arith.constant 0 : index
    %34 = vector.load %arg6[%c0_12, %c0_13] : memref<32x4xf32, #tpu.memory_space<vmem>>, vector<32x4xf32>
    %cst_14 = arith.constant dense<0.000000e+00> : vector<8x4xf32>
    %35 = tpu.matmul %33, %34, %cst_14 {dimension_numbers = #tpu.dot_dimension_numbers<[1], [0], [0], [1], [0, 0, 1, 1], [], []>} : vector<8x32xf32>, vector<32x4xf32>, vector<8x4xf32> -> vector<8x4xf32>
    %c0_15 = arith.constant 0 : index
    %c0_16 = arith.constant 0 : index
    %36 = vector.load %arg7[%c0_15, %c0_16] : memref<1x4xf32, #tpu.memory_space<vmem>>, vector<1x4xf32>
    %37 = vector.broadcast %36 : vector<1x4xf32> to vector<8x4xf32>
    %38 = arith.addf %35, %37 : vector<8x4xf32>
    %39 = vector.extract_strided_slice %38 {offsets = [0, 0], sizes = [8, 2], strides = [1, 1]} : vector<8x4xf32> to vector<8x2xf32>
    %c0_17 = arith.constant 0 : index
    %c0_18 = arith.constant 0 : index
    %40 = vector.load %arg8[%c0_17, %c0_18] : memref<8x2xf32, #tpu.memory_space<vmem>>, vector<8x2xf32>
    tpu.vector_store %arg8[%c0_17, %c0_18], %39 {strides = array<i32>} : memref<8x2xf32, #tpu.memory_space<vmem>>, vector<8x2xf32>,
    %41 = vector.extract_strided_slice %38 {offsets = [0, 2], sizes = [8, 2], strides = [1, 1]} : vector<8x4xf32> to vector<8x2xf32>
    %42 = math.exp %41 : vector<8x2xf32>
    %cst_19 = arith.constant 1.000000e+00 : f32
    %43 = vector.broadcast %cst_19 : f32 to vector<8x2xf32>
    %44 = arith.addf %43, %42 : vector<8x2xf32>
    %45 = math.log %44 : vector<8x2xf32>
    %c0_20 = arith.constant 0 : index
    %c0_21 = arith.constant 0 : index
    %46 = vector.load %arg9[%c0_20, %c0_21] : memref<8x2xf32, #tpu.memory_space<vmem>>, vector<8x2xf32>
    tpu.vector_store %arg9[%c0_20, %c0_21], %45 {strides = array<i32>} : memref<8x2xf32, #tpu.memory_space<vmem>>, vector<8x2xf32>,
    return
  }
  func.func @transform_0(%arg0: i32) -> (i32, i32) {
    %c0_i32 = arith.constant 0 : i32
    %c0_i32_0 = arith.constant 0 : i32
    return %arg0, %c0_i32 : i32, i32
  }
  func.func @transform_1(%arg0: i32) -> (i32, i32) {
    %c0_i32 = arith.constant 0 : i32
    %c0_i32_0 = arith.constant 0 : i32
    %c0_i32_1 = arith.constant 0 : i32
    return %c0_i32, %c0_i32_0 : i32, i32
  }
  func.func @transform_2(%arg0: i32) -> (i32, i32) {
    %c0_i32 = arith.constant 0 : i32
    %c0_i32_0 = arith.constant 0 : i32
    %c0_i32_1 = arith.constant 0 : i32
    return %c0_i32, %c0_i32_0 : i32, i32
  }
  func.func @transform_3(%arg0: i32) -> (i32, i32) {
    %c0_i32 = arith.constant 0 : i32
    %c0_i32_0 = arith.constant 0 : i32
    %c0_i32_1 = arith.constant 0 : i32
    return %c0_i32, %c0_i32_0 : i32, i32
  }
  func.func @transform_4(%arg0: i32) -> (i32, i32) {
    %c0_i32 = arith.constant 0 : i32
    %c0_i32_0 = arith.constant 0 : i32
    %c0_i32_1 = arith.constant 0 : i32
    return %c0_i32, %c0_i32_0 : i32, i32
  }
  func.func @transform_5(%arg0: i32) -> (i32, i32) {
    %c0_i32 = arith.constant 0 : i32
    %c0_i32_0 = arith.constant 0 : i32
    %c0_i32_1 = arith.constant 0 : i32
    return %c0_i32, %c0_i32_0 : i32, i32
  }
  func.func @transform_6(%arg0: i32) -> (i32, i32) {
    %c0_i32 = arith.constant 0 : i32
    %c0_i32_0 = arith.constant 0 : i32
    %c0_i32_1 = arith.constant 0 : i32
    return %c0_i32, %c0_i32_0 : i32, i32
  }
  func.func @transform_7(%arg0: i32) -> (i32, i32) {
    %c0_i32 = arith.constant 0 : i32
    %c0_i32_0 = arith.constant 0 : i32
    return %arg0, %c0_i32 : i32, i32
  }
  func.func @transform_8(%arg0: i32) -> (i32, i32) {
    %c0_i32 = arith.constant 0 : i32
    %c0_i32_0 = arith.constant 0 : i32
    return %arg0, %c0_i32 : i32, i32
  }
}

</mosaic_0001>

<llo_original>
// kernel: policy_network_forward.1
$region0: #{policy_network_forward.1}
  #allocation0 [shape = 'u32[]', space=smem, size = 0x4, offset = 0x4, fixed_abs, tag = 'smem constant byte address 0x4 - core index']
  #allocation1 [shape = 'u32[144,128]{1,0:T(1,128)}', space=vmem, size = 0x12000, scoped, tag = 'internal scratch']
  %s0 = inlined_call_operand.vmem [shape: f32[8,4], index: 0, kind: input, shape index: {}]
  %s1 = inlined_call_operand.vmem [shape: f32[4,16], index: 1, kind: input, shape index: {}]
  %s2 = inlined_call_operand.vmem [shape: f32[1,16], index: 2, kind: input, shape index: {}]
  %s3 = inlined_call_operand.vmem [shape: f32[16,32], index: 3, kind: input, shape index: {}]
  %s4 = inlined_call_operand.vmem [shape: f32[1,32], index: 4, kind: input, shape index: {}]
  %s5 = inlined_call_operand.vmem [shape: f32[32,4], index: 5, kind: input, shape index: {}]
  %s6 = inlined_call_operand.vmem [shape: f32[1,4], index: 6, kind: input, shape index: {}]
  %s7 = inlined_call_operand.vmem [shape: f32[8,2], index: 7, kind: output, shape index: {0}]
  %s8 = inlined_call_operand.vmem [shape: f32[8,2], index: 8, kind: output, shape index: {1}]
  %9 = xla_tuple %s7, %s8
  %s10 = sld [smem:[#allocation0]]
  $region46: #{policy_network_forward.1} parent=0
    _
  %s12 = ssub.s32 1, %s10
  %s13 = scalar_select 0, %s12, %s10
  // Predicated region
  $region2: #{policy_network_forward.1} parent=0 // pred_check
    _
  $region3: #{policy_network_forward.1} parent=0 // pred_check_branch
    %15 = sbr.rel (0) target = $region5
  $region4: #{policy_network_forward.1} parent=0 // pred_region
    _
  $region5: #{policy_network_forward.1} parent=0 // pred_fallthru
    _
  // Predicated region
  $region6: #{policy_network_forward.1} parent=0 // pred_check
    _
  $region7: #{policy_network_forward.1} parent=0 // pred_check_branch
    %17 = sbr.rel (0) target = $region9
  $region8: #{policy_network_forward.1} parent=0 // pred_region
    _
  $region9: #{policy_network_forward.1} parent=0 // pred_fallthru
    _
  // Predicated region
  $region10: #{policy_network_forward.1} parent=0 // pred_check
    _
  $region11: #{policy_network_forward.1} parent=0 // pred_check_branch
    %19 = sbr.rel (0) target = $region13
  $region12: #{policy_network_forward.1} parent=0 // pred_region
    _
  $region13: #{policy_network_forward.1} parent=0 // pred_fallthru
    _
  // Predicated region
  $region14: #{policy_network_forward.1} parent=0 // pred_check
    _
  $region15: #{policy_network_forward.1} parent=0 // pred_check_branch
    %21 = sbr.rel (0) target = $region17
  $region16: #{policy_network_forward.1} parent=0 // pred_region
    _
  $region17: #{policy_network_forward.1} parent=0 // pred_fallthru
    _
  // Predicated region
  $region18: #{policy_network_forward.1} parent=0 // pred_check
    _
  $region19: #{policy_network_forward.1} parent=0 // pred_check_branch
    %23 = sbr.rel (0) target = $region21
  $region20: #{policy_network_forward.1} parent=0 // pred_region
    _
  $region21: #{policy_network_forward.1} parent=0 // pred_fallthru
    _
  // Predicated region
  $region22: #{policy_network_forward.1} parent=0 // pred_check
    _
  $region23: #{policy_network_forward.1} parent=0 // pred_check_branch
    %25 = sbr.rel (0) target = $region25
  $region24: #{policy_network_forward.1} parent=0 // pred_region
    _
  $region25: #{policy_network_forward.1} parent=0 // pred_fallthru
    _
  // Predicated region
  $region26: #{policy_network_forward.1} parent=0 // pred_check
    _
  $region27: #{policy_network_forward.1} parent=0 // pred_check_branch
    %27 = sbr.rel (0) target = $region29
  $region28: #{policy_network_forward.1} parent=0 // pred_region
    _
  $region29: #{policy_network_forward.1} parent=0 // pred_fallthru
    _
  %v28 = vld [vmem:[%s0] sm:$0xff]
  %v29 = vld [vmem:[%s2] sm:$0x1]
  %v30 = vld [vmem:[%s1] sm:$0x1]
  %32 = vset.pattern.permute.xlu0 0
  %33 = vperm.xlu0 %32, %v28
  %v34 = vpop.permute.xlu0 %33
  %v36 = vlaneseq
  %v37 = vshrl.u32 %v36, 7
  %v38 = vsub.s32 0, %v37
  %v39 = vrot.slane %v30, %v38
  %v40 = vmul.f32 %v34, %v39
  %v42 = vlaneseq
  %v43 = vshrl.u32 %v42, 7
  %v44 = vsub.s32 0, %v43
  %v45 = vrot.slane %v29, %v44
  %v47 = vadd.f32 %v45, %v40
  %v48 = vld [vmem:[%s1 + $0x1] sm:$0x1]
  %49 = vset.pattern.permute.xlu0 1
  %50 = vperm.xlu0 %49, %v28
  %v51 = vpop.permute.xlu0 %50
  %v53 = vlaneseq
  %v54 = vshrl.u32 %v53, 7
  %v55 = vsub.s32 0, %v54
  %v56 = vrot.slane %v48, %v55
  %v57 = vmul.f32 %v51, %v56
  %v58 = vadd.f32 %v47, %v57
  %v59 = vld [vmem:[%s1 + $0x2] sm:$0x1]
  %60 = vset.pattern.permute.xlu0 2
  %61 = vperm.xlu0 %60, %v28
  %v62 = vpop.permute.xlu0 %61
  %v64 = vlaneseq
  %v65 = vshrl.u32 %v64, 7
  %v66 = vsub.s32 0, %v65
  %v67 = vrot.slane %v59, %v66
  %v68 = vmul.f32 %v62, %v67
  %v69 = vadd.f32 %v58, %v68
  %v70 = vld [vmem:[%s1 + $0x3] sm:$0x1]
  %71 = vset.pattern.permute.xlu0 3
  %72 = vperm.xlu0 %71, %v28
  %v73 = vpop.permute.xlu0 %72
  %v75 = vlaneseq
  %v76 = vshrl.u32 %v75, 7
  %v77 = vsub.s32 0, %v76
  %v78 = vrot.slane %v70, %v77
  %v79 = vmul.f32 %v73, %v78
  %v80 = vadd.f32 %v69, %v79
  %v81 = vtanh.pop %v80
  %v82 = vld [vmem:[%s3] sm:$0xff]
  %v83 = vld [vmem:[%s3 + $0x8] sm:$0xff]
  %v84 = vld [vmem:[%s4] sm:$0x1]
  %v86 = vlaneseq
  %v87 = vshrl.u32 %v86, 7
  %v88 = vsub.s32 0, %v87
  %v89 = vrot.slane %v84, %v88
  %vm91 = vcmask 130048
  %v93 = vsel %vm91, %v81, 0
  %95 = vmatprep.subr.mxu0 0.0
  %96 = vmatpush1.msra.mxu0 %v82
  %97 = vmatprep.subr.mxu0 0.0
  %98 = vmatpush1.msra.mxu0 %v83
  %99 = vmatprep.subr.mxu0 0.0
  %100 = vmatpush1.msra.mxu0 0.0
  %101 = vmatprep.subr.mxu0 0.0
  %102 = vmatpush1.msra.mxu0 0.0
  %103 = vmatprep.subr.mxu0 0.0
  %104 = vmatpush1.msra.mxu0 0.0
  %105 = vmatprep.subr.mxu0 0.0
  %106 = vmatpush1.msra.mxu0 0.0
  %107 = vmatprep.subr.mxu0 0.0
  %108 = vmatpush1.msra.mxu0 0.0
  %109 = vmatprep.subr.mxu0 0.0
  %110 = vmatpush1.msra.mxu0 0.0
  %111 = vmatprep.subr.mxu0 0.0
  %112 = vmatpush1.msra.mxu0 0.0
  %113 = vmatprep.subr.mxu0 0.0
  %114 = vmatpush1.msra.mxu0 0.0
  %115 = vmatprep.subr.mxu0 0.0
  %116 = vmatpush1.msra.mxu0 0.0
  %117 = vmatprep.subr.mxu0 0.0
  %118 = vmatpush1.msra.mxu0 0.0
  %119 = vmatprep.subr.mxu0 0.0
  %120 = vmatpush1.msra.mxu0 0.0
  %121 = vmatprep.subr.mxu0 0.0
  %122 = vmatpush1.msra.mxu0 0.0
  %123 = vmatprep.subr.mxu0 0.0
  %124 = vmatpush1.msra.mxu0 0.0
  %125 = vmatprep.subr.mxu0 0.0
  %126 = vmatpush1.msra.mxu0 0.0
  %127 = vmatprep.subr.mxu0 0.0
  %128 = vmatpush1.msra.mxu0 0.0
  %129 = vmatprep.subr.mxu0 0.0
  %130 = vmatpush1.msra.mxu0 0.0
  %131 = vmatprep.subr.mxu0 0.0
  %132 = vmatpush1.msra.mxu0 0.0
  %133 = vmatprep.subr.mxu0 0.0
  %134 = vmatpush1.msra.mxu0 0.0
  %135 = vmatprep.subr.mxu0 0.0
  %136 = vmatpush1.msra.mxu0 0.0
  %137 = vmatprep.subr.mxu0 0.0
  %138 = vmatpush1.msra.mxu0 0.0
  %139 = vmatprep.subr.mxu0 0.0
  %140 = vmatpush1.msra.mxu0 0.0
  %141 = vmatprep.subr.mxu0 0.0
  %142 = vmatpush1.msra.mxu0 0.0
  %143 = vmatprep.subr.mxu0 0.0
  %144 = vmatpush1.msra.mxu0 0.0
  %145 = vmatprep.subr.mxu0 0.0
  %146 = vmatpush1.msra.mxu0 0.0
  %147 = vmatprep.subr.mxu0 0.0
  %148 = vmatpush1.msra.mxu0 0.0
  %149 = vmatprep.subr.mxu0 0.0
  %150 = vmatpush1.msra.mxu0 0.0
  %151 = vmatprep.subr.mxu0 0.0
  %152 = vmatpush1.msra.mxu0 0.0
  %153 = vmatprep.subr.mxu0 0.0
  %154 = vmatpush1.msra.mxu0 0.0
  %155 = vmatprep.subr.mxu0 0.0
  %156 = vmatpush1.msra.mxu0 0.0
  %157 = vmatprep.subr.mxu0 0.0
  %158 = vmatpush1.msra.mxu0 0.0
  %159 = vmatprep.mubr.f32.mxu0 0.0
  %160 = vmatmul.mubr.f32.gmra.mrb[0].mxu0 %v93
  %v161 = vpop.f32.mrb[0].mxu0
  %v162 = vadd.f32 %v89, %v161
  %v163 = vpop.f32.mrb[0].mxu0
  %164 = vdwg.mxu0
  %v165 = vtanh.pop %v162
  %v166 = vld [vmem:[%s5] sm:$0xff]
  %v167 = vld [vmem:[%s5 + $0x8] sm:$0xff]
  %v168 = vld [vmem:[%s5 + $0x10] sm:$0xff]
  %v169 = vld [vmem:[%s5 + $0x18] sm:$0xff]
  %v170 = vld [vmem:[%s6] sm:$0x1]
  %v172 = vlaneseq
  %v173 = vshrl.u32 %v172, 7
  %v174 = vsub.s32 0, %v173
  %v175 = vrot.slane %v170, %v174
  %vm177 = vcmask 261120
  %v179 = vsel %vm177, %v165, 0
  %181 = vmatprep.subr.mxu0 0.0
  %182 = vmatpush1.msra.mxu0 %v166
  %183 = vmatprep.subr.mxu0 0.0
  %184 = vmatpush1.msra.mxu0 %v167
  %185 = vmatprep.subr.mxu0 0.0
  %186 = vmatpush1.msra.mxu0 %v168
  %187 = vmatprep.subr.mxu0 0.0
  %188 = vmatpush1.msra.mxu0 %v169
  %189 = vmatprep.subr.mxu0 0.0
  %190 = vmatpush1.msra.mxu0 0.0
  %191 = vmatprep.subr.mxu0 0.0
  %192 = vmatpush1.msra.mxu0 0.0
  %193 = vmatprep.subr.mxu0 0.0
  %194 = vmatpush1.msra.mxu0 0.0
  %195 = vmatprep.subr.mxu0 0.0
  %196 = vmatpush1.msra.mxu0 0.0
  %197 = vmatprep.subr.mxu0 0.0
  %198 = vmatpush1.msra.mxu0 0.0
  %199 = vmatprep.subr.mxu0 0.0
  %200 = vmatpush1.msra.mxu0 0.0
  %201 = vmatprep.subr.mxu0 0.0
  %202 = vmatpush1.msra.mxu0 0.0
  %203 = vmatprep.subr.mxu0 0.0
  %204 = vmatpush1.msra.mxu0 0.0
  %205 = vmatprep.subr.mxu0 0.0
  %206 = vmatpush1.msra.mxu0 0.0
  %207 = vmatprep.subr.mxu0 0.0
  %208 = vmatpush1.msra.mxu0 0.0
  %209 = vmatprep.subr.mxu0 0.0
  %210 = vmatpush1.msra.mxu0 0.0
  %211 = vmatprep.subr.mxu0 0.0
  %212 = vmatpush1.msra.mxu0 0.0
  %213 = vmatprep.subr.mxu0 0.0
  %214 = vmatpush1.msra.mxu0 0.0
  %215 = vmatprep.subr.mxu0 0.0
  %216 = vmatpush1.msra.mxu0 0.0
  %217 = vmatprep.subr.mxu0 0.0
  %218 = vmatpush1.msra.mxu0 0.0
  %219 = vmatprep.subr.mxu0 0.0
  %220 = vmatpush1.msra.mxu0 0.0
  %221 = vmatprep.subr.mxu0 0.0
  %222 = vmatpush1.msra.mxu0 0.0
  %223 = vmatprep.subr.mxu0 0.0
  %224 = vmatpush1.msra.mxu0 0.0
  %225 = vmatprep.subr.mxu0 0.0
  %226 = vmatpush1.msra.mxu0 0.0
  %227 = vmatprep.subr.mxu0 0.0
  %228 = vmatpush1.msra.mxu0 0.0
  %229 = vmatprep.subr.mxu0 0.0
  %230 = vmatpush1.msra.mxu0 0.0
  %231 = vmatprep.subr.mxu0 0.0
  %232 = vmatpush1.msra.mxu0 0.0
  %233 = vmatprep.subr.mxu0 0.0
  %234 = vmatpush1.msra.mxu0 0.0
  %235 = vmatprep.subr.mxu0 0.0
  %236 = vmatpush1.msra.mxu0 0.0
  %237 = vmatprep.subr.mxu0 0.0
  %238 = vmatpush1.msra.mxu0 0.0
  %239 = vmatprep.subr.mxu0 0.0
  %240 = vmatpush1.msra.mxu0 0.0
  %241 = vmatprep.subr.mxu0 0.0
  %242 = vmatpush1.msra.mxu0 0.0
  %243 = vmatprep.subr.mxu0 0.0
  %244 = vmatpush1.msra.mxu0 0.0
  %245 = vmatprep.mubr.f32.mxu0 0.0
  %246 = vmatmul.mubr.f32.gmra.mrb[0].mxu0 %v179
  %v247 = vpop.f32.mrb[0].mxu0
  %v248 = vadd.f32 %v175, %v247
  %v249 = vpop.f32.mrb[0].mxu0
  %250 = vdwg.mxu0
  %vm251 = vcmask 15360
  %252 = vst.msk [vmem:[%s7] sm:$0xff] %vm251, %v248
  %v253 = vmul.f32 %v248, 1.442695
  %v254 = vpow.pop %v253
  %v255 = vadd.f32 %v254, 1.0
  %v256 = vlog2.pop %v255
  %v257 = vmul.f32 %v256, 0.6931472
  %259 = vrot.lane.b32.xlu0 %v257, 126
  %v260 = vpop.permute.xlu0 %259
  %262 = vst.msk [vmem:[%s8] sm:$0xff] %vm251, %v260
  // Predicated region
  $region30: #{policy_network_forward.1} parent=0 // pred_check
    _
  $region31: #{policy_network_forward.1} parent=0 // pred_check_branch
    %264 = sbr.rel (0) target = $region33
  $region32: #{policy_network_forward.1} parent=0 // pred_region
    _
  $region33: #{policy_network_forward.1} parent=0 // pred_fallthru
    _
  // Predicated region
  $region34: #{policy_network_forward.1} parent=0 // pred_check
    _
  $region35: #{policy_network_forward.1} parent=0 // pred_check_branch
    %266 = sbr.rel (0) target = $region37
  $region36: #{policy_network_forward.1} parent=0 // pred_region
    _
  $region37: #{policy_network_forward.1} parent=0 // pred_fallthru
    _
  // Predicated region
  $region38: #{policy_network_forward.1} parent=0 // pred_check
    _
  $region39: #{policy_network_forward.1} parent=0 // pred_check_branch
    %268 = sbr.rel (0) target = $region41
  $region40: #{policy_network_forward.1} parent=0 // pred_region
    _
  $region41: #{policy_network_forward.1} parent=0 // pred_fallthru
    _
  // Predicated region
  $region42: #{policy_network_forward.1} parent=0 // pred_check
    _
  $region43: #{policy_network_forward.1} parent=0 // pred_check_branch
    %270 = sbr.rel (0) target = $region45
  $region44: #{policy_network_forward.1} parent=0 // pred_region
    _
  $region45: #{policy_network_forward.1} parent=0 // pred_fallthru
    _

</llo_original>
